<compile_context>
chip_gen: v7x
topology: tpu7x:2x2x1
jax: 0.10.0
libtpu: 0.0.40
codegen_flags: <defaults>
</compile_context>

<pallas_src>
import functools

import jax
import jax.numpy as jnp
from jax.experimental import pallas as pl
from jax.experimental.pallas import tpu as pltpu

_LANES = 128


# --------------------------------------------------------------------------- #
# Kernels
# --------------------------------------------------------------------------- #
def _masked_ce_kernel(logits_ref, tgt_ref, msk_ref, loss_ref, cnt_ref,
                      *, ignore_index: int):
    """One (batch, spatial-tile) grid step with an ignore mask.

    logits_ref : (1, C, TR, 128) float  -- class logits
    tgt_ref    : (1, TR, 128)    int    -- target class index per pixel
    msk_ref    : (1, TR, 128)    num    -- ignore mask (0 -> excluded)
    loss_ref   : (1, 1, 1, 128)  f32    -- per-lane partial sum of masked loss
    cnt_ref    : (1, 1, 1, 128)  f32    -- per-lane partial sum of mask
    """
    x = logits_ref[0].astype(jnp.float32)        # (C, TR, 128)
    tgt = tgt_ref[0].astype(jnp.int32)           # (TR, 128)
    msk = msk_ref[0].astype(jnp.float32)         # (TR, 128)

    # log-sum-exp over the class axis: pure vreg-wise VPU/EUP work.
    m = jnp.max(x, axis=0)                                         # (TR,128)
    lse = jnp.log(jnp.sum(jnp.exp(x - m[None]), axis=0)) + m       # (TR,128)

    # gather the target-class logit via where-select over the class axis.
    cls = jax.lax.broadcasted_iota(jnp.int32, x.shape, 0)          # (C,TR,128)
    x_t = jnp.sum(jnp.where(cls == tgt[None], x, 0.0), axis=0)     # (TR,128)

    valid = tgt != ignore_index
    # torch semantics: pixel loss is 0 at ignore_index, then multiplied by mask.
    pix = jnp.where(valid, lse - x_t, 0.0) * msk                   # (TR,128)

    loss_ref[...] = jnp.sum(pix, axis=0, keepdims=True)[None, None]
    cnt_ref[...] = jnp.sum(msk, axis=0, keepdims=True)[None, None]


def _ce_kernel_nomask(logits_ref, tgt_ref, loss_ref, *, ignore_index: int):
    """Same as above without a mask input (denominator handled in wrapper)."""
    x = logits_ref[0].astype(jnp.float32)        # (C, TR, 128)
    tgt = tgt_ref[0].astype(jnp.int32)           # (TR, 128)

    m = jnp.max(x, axis=0)
    lse = jnp.log(jnp.sum(jnp.exp(x - m[None]), axis=0)) + m
    cls = jax.lax.broadcasted_iota(jnp.int32, x.shape, 0)
    x_t = jnp.sum(jnp.where(cls == tgt[None], x, 0.0), axis=0)

    valid = tgt != ignore_index
    pix = jnp.where(valid, lse - x_t, 0.0)

    loss_ref[...] = jnp.sum(pix, axis=0, keepdims=True)[None, None]


# --------------------------------------------------------------------------- #
# Wrapper
# --------------------------------------------------------------------------- #
def _cdiv(a, b):
    return -(-a // b)


def _choose_tiling(B, C, R, dtype_bytes, vmem_budget_bytes):
    """Pick (num spatial tiles, rows-of-128 per tile) from a VMEM budget."""
    # Per 128-lane row of the block: double-buffered logits + ~5 f32 temps
    # (x, exp, iota/eq, where-select, slack) + small per-pixel rows.
    per_row = C * _LANES * (2 * dtype_bytes + 5 * 4) + _LANES * 64
    rows_budget = max(8, min(256, vmem_budget_bytes // max(per_row, 1)))
    rows_budget = max(8, (rows_budget // 8) * 8)

    # v7x has 2 TensorCores: make sure a single-image call still has >=2 steps.
    min_gs = 2 if (B == 1 and R >= 16) else 1

    gs = max(_cdiv(R, rows_budget), min_gs)
    if gs <= 1:
        return 1, R
    tr = _cdiv(R, gs)
    tr = ((tr + 7) // 8) * 8          # second-minor block dim must be 8-aligned
    gs = _cdiv(R, tr)
    return gs, tr


def masked_cross_entropy_loss(pred_logits, target_labels, ignore_mask=None,
                              reduction: str = "mean", ignore_index: int = -100,
                              vmem_budget_bytes: int = 16 * 1024 * 1024):
    """JAX/Pallas equivalent of MaskedCrossEntropyLoss.forward.

    pred_logits   : (B, C, H, W) float (bf16/f32 kept in input dtype through DMA)
    target_labels : (B, H, W)    int   (int8/int16/int32 DMA'd natively)
    ignore_mask   : (B, H, W)    optional; pixels where mask == 0 are ignored
    """
    if reduction not in ("mean", "sum"):
        raise ValueError("Unsupported reduction type.")

    B, C, H, W = pred_logits.shape
    HW = H * W

    if ignore_mask is not None and ignore_mask.shape != target_labels.shape:
        raise ValueError(
            f"Ignore mask shape {ignore_mask.shape} does not match "
            f"pixel-wise loss shape {target_labels.shape}.")

    # ---- side-input dtype plumbing: keep them as narrow as possible ----
    tgt = target_labels
    ok_int = (jnp.dtype(jnp.int8), jnp.dtype(jnp.int16), jnp.dtype(jnp.int32))
    if jnp.dtype(tgt.dtype) not in ok_int:
        tgt = tgt.astype(jnp.int32)

    msk = None
    if ignore_mask is not None:
        msk = ignore_mask
        if msk.dtype == jnp.bool_:
            msk = msk.astype(jnp.int8)
        elif jnp.issubdtype(msk.dtype, jnp.unsignedinteger):
            msk = msk.astype(jnp.int32)

    # ---- tiling ----
    R = _cdiv(HW, _LANES)                 # rows of 128 pixels (lane-aligned)
    HW128 = R * _LANES
    dtype_bytes = jnp.dtype(pred_logits.dtype).itemsize
    gs, TR = _choose_tiling(B, C, R, dtype_bytes, vmem_budget_bytes)
    R_pad = gs * TR
    HW_pad = R_pad * _LANES

    # ---- layout: (B, C, R, 128) logits, (B, R_pad, 128) targets / mask ----
    x = pred_logits.reshape(B, C, HW)
    if HW128 != HW:
        # One pad copy only when HW is not a multiple of 128 (lane alignment).
        x = jnp.pad(x, ((0, 0), (0, 0), (0, HW128 - HW)))
    x = x.reshape(B, C, R, _LANES)

    tgt2 = tgt.reshape(B, HW)
    msk2 = msk.reshape(B, HW) if msk is not None else None
    pad_cols = HW_pad - HW
    if pad_cols > 0:
        info = jnp.iinfo(tgt2.dtype)
        if not (info.min <= ignore_index <= info.max):
            tgt2 = tgt2.astype(jnp.int32)
        # Padded pixels: target = ignore_index, mask = 0  -> contribute nothing.
        tgt2 = jnp.pad(tgt2, ((0, 0), (0, pad_cols)),
                       constant_values=ignore_index)
        if msk2 is not None:
            msk2 = jnp.pad(msk2, ((0, 0), (0, pad_cols)))
    tgt2 = tgt2.reshape(B, R_pad, _LANES)
    if msk2 is not None:
        msk2 = msk2.reshape(B, R_pad, _LANES)

    # ---- specs ----
    logits_spec = pl.BlockSpec((1, C, TR, _LANES), lambda b, s: (b, 0, s, 0))
    row_spec = pl.BlockSpec((1, TR, _LANES), lambda b, s: (b, s, 0))
    out_spec = pl.BlockSpec((1, 1, 1, _LANES), lambda b, s: (b, s, 0, 0))
    grid = (B, gs)

    est_vmem = TR * _LANES * (C * (2 * dtype_bytes + 5 * 4) + 64) + (1 << 20)
    vmem_limit = int(min(max(2 * est_vmem, 32 << 20), 48 << 20))
    cparams = pltpu.CompilerParams(
        dimension_semantics=("parallel", "parallel"),
        vmem_limit_bytes=vmem_limit)

    side_bytes = tgt2.size * jnp.dtype(tgt2.dtype).itemsize
    if msk2 is not None:
        side_bytes += msk2.size * jnp.dtype(msk2.dtype).itemsize
    n_outs = 2 if msk2 is not None else 1
    cost = pl.CostEstimate(
        flops=int(8 * B * C * HW),
        transcendentals=int(B * HW * (C + 1)),
        bytes_accessed=int(x.size * dtype_bytes + side_bytes
                           + n_outs * B * gs * _LANES * 4))

    if msk2 is not None:
        kernel = functools.partial(_masked_ce_kernel, ignore_index=ignore_index)
        loss_parts, cnt_parts = pl.pallas_call(
            kernel,
            out_shape=(jax.ShapeDtypeStruct((B, gs, 1, _LANES), jnp.float32),
                       jax.ShapeDtypeStruct((B, gs, 1, _LANES), jnp.float32)),
            grid_spec=pltpu.PrefetchScalarGridSpec(
                num_scalar_prefetch=0, grid=grid,
                in_specs=[logits_spec, row_spec, row_spec],
                out_specs=[out_spec, out_spec]),
            compiler_params=cparams,
            cost_estimate=cost,
        )(x, tgt2, msk2)
        loss_sum = jnp.sum(loss_parts)
        mask_sum = jnp.sum(cnt_parts)
        if reduction == "mean":
            return jnp.where(mask_sum > 0, loss_sum / mask_sum, jnp.float32(0.0))
        return loss_sum
    else:
        kernel = functools.partial(_ce_kernel_nomask, ignore_index=ignore_index)
        loss_parts = pl.pallas_call(
            kernel,
            out_shape=jax.ShapeDtypeStruct((B, gs, 1, _LANES), jnp.float32),
            grid_spec=pltpu.PrefetchScalarGridSpec(
                num_scalar_prefetch=0, grid=grid,
                in_specs=[logits_spec, row_spec],
                out_specs=out_spec),
            compiler_params=cparams,
            cost_estimate=cost,
        )(x, tgt2)
        loss_sum = jnp.sum(loss_parts)
        if reduction == "mean":
            # torch's pixel_wise_loss.mean(): denominator is the total pixel
            # count (statically known) — no kernel-side count needed.
            return loss_sum / jnp.float32(B * HW)
        return loss_sum


# --------------------------------------------------------------------------- #
# Pure-JAX reference (matches torch semantics)
# --------------------------------------------------------------------------- #
def _reference(pred_logits, target_labels, ignore_mask, reduction, ignore_index):
    logp = jax.nn.log_softmax(pred_logits.astype(jnp.float32), axis=1)
    tgt = target_labels.astype(jnp.int32)
    safe_tgt = jnp.where(tgt == ignore_index, 0, tgt)
    nll = -jnp.take_along_axis(logp, safe_tgt[:, None, :, :], axis=1)[:, 0]
    nll = jnp.where(tgt == ignore_index, 0.0, nll)
    if ignore_mask is not None:
        m = ignore_mask.astype(jnp.float32)
        masked = nll * m
        if reduction == "mean":
            denom = m.sum()
            return jnp.where(denom > 0, masked.sum() / denom, 0.0)
        return masked.sum()
    return nll.mean() if reduction == "mean" else nll.sum()


if __name__ == "__main__":
    ignore_index = -100
    key = jax.random.PRNGKey(0)
    k1, k2, k3, k4 = jax.random.split(key, 4)

    # ---- test 1: B=2, C=4, H=W=16 (lane-aligned, single tile per batch) ----
    B, C, H, W = 2, 4, 16, 16
    pred_logits = jax.random.normal(k1, (B, C, H, W), dtype=jnp.float32)
    target_labels = jax.random.randint(k2, (B, H, W), 0, C, dtype=jnp.int32)
    drop = jax.random.bernoulli(k3, 0.1, (B, H, W))
    target_labels = jnp.where(drop, ignore_index, target_labels)
    ignore_mask = jax.random.bernoulli(k4, 0.8, (B, H, W)).astype(jnp.float32)

    loss = masked_cross_entropy_loss(pred_logits, target_labels, ignore_mask,
                                     reduction="mean", ignore_index=ignore_index)
    loss = jax.block_until_ready(loss)
    ref = _reference(pred_logits, target_labels, ignore_mask, "mean", ignore_index)
    assert jnp.allclose(loss, ref, atol=1e-4, rtol=1e-4), (loss, ref)

    loss_nm = masked_cross_entropy_loss(pred_logits, target_labels, None,
                                        reduction="mean", ignore_index=ignore_index)
    loss_nm = jax.block_until_ready(loss_nm)
    ref_nm = _reference(pred_logits, target_labels, None, "mean", ignore_index)
    assert jnp.allclose(loss_nm, ref_nm, atol=1e-4, rtol=1e-4), (loss_nm, ref_nm)

    loss_s = masked_cross_entropy_loss(pred_logits, target_labels, ignore_mask,
                                       reduction="sum", ignore_index=ignore_index)
    loss_s = jax.block_until_ready(loss_s)
    ref_s = _reference(pred_logits, target_labels, ignore_mask, "sum", ignore_index)
    assert jnp.allclose(loss_s, ref_s, atol=1e-4, rtol=1e-4), (loss_s, ref_s)

    # ---- test 2: HW=400 (not lane-aligned -> one pad copy, pixels masked) ----
    B2, C2, H2, W2 = 2, 5, 20, 20
    q1, q2, q3, q4 = jax.random.split(jax.random.PRNGKey(1), 4)
    pl2 = jax.random.normal(q1, (B2, C2, H2, W2), dtype=jnp.float32)
    tl2 = jax.random.randint(q2, (B2, H2, W2), 0, C2, dtype=jnp.int32)
    tl2 = jnp.where(jax.random.bernoulli(q3, 0.1, (B2, H2, W2)), ignore_index, tl2)
    im2 = jax.random.bernoulli(q4, 0.7, (B2, H2, W2)).astype(jnp.float32)

    loss_r = masked_cross_entropy_loss(pl2, tl2, im2, reduction="mean",
                                       ignore_index=ignore_index)
    loss_r = jax.block_until_ready(loss_r)
    ref_r = _reference(pl2, tl2, im2, "mean", ignore_index)
    assert jnp.allclose(loss_r, ref_r, atol=1e-4, rtol=1e-4), (loss_r, ref_r)

    # ---- test 3: B=1, multi-tile grid, narrow dtypes (int16 targets, bool mask),
    #      tiny VMEM budget to force several spatial tiles + row padding ----
    B3, C3, H3, W3 = 1, 6, 48, 48
    r1, r2, r3, r4 = jax.random.split(jax.random.PRNGKey(2), 4)
    pl3 = jax.random.normal(r1, (B3, C3, H3, W3), dtype=jnp.float32)
    tl3 = jax.random.randint(r2, (B3, H3, W3), 0, C3, dtype=jnp.int32)
    tl3 = jnp.where(jax.random.bernoulli(r3, 0.1, (B3, H3, W3)), ignore_index, tl3)
    tl3 = tl3.astype(jnp.int16)
    im3 = jax.random.bernoulli(r4, 0.6, (B3, H3, W3))     # bool mask

    loss_m = masked_cross_entropy_loss(pl3, tl3, im3, reduction="mean",
                                       ignore_index=ignore_index,
                                       vmem_budget_bytes=1)
    loss_m = jax.block_until_ready(loss_m)
    ref_m = _reference(pl3, tl3, im3, "mean", ignore_index)
    assert jnp.allclose(loss_m, ref_m, atol=1e-4, rtol=1e-4), (loss_m, ref_m)

    print("KERNEL_OK")
</pallas_src>

<mosaic_0001>
module attributes {stable_mosaic.version = 11 : i64} {
  func.func @_masked_ce_kernel(%arg0: i32, %arg1: i32, %arg2: memref<1x4x2x128xf32, #tpu.memory_space<vmem>>, %arg3: memref<1x2x128xi32, #tpu.memory_space<vmem>>, %arg4: memref<1x2x128xf32, #tpu.memory_space<vmem>>, %arg5: memref<1x1x1x128xf32, #tpu.memory_space<vmem>>, %arg6: memref<1x1x1x128xf32, #tpu.memory_space<vmem>>) attributes {dimension_semantics = [#tpu.dimension_semantics<parallel>, #tpu.dimension_semantics<parallel>], iteration_bounds = array<i64: 2, 1>, scalar_prefetch = 0 : i64, scratch_operands = 0 : i64, tpu.core_type = #tpu.core_type<tc>, window_params = [{transform_indices = @transform_0, window_bounds = array<i64: 1, 4, 2, 128>}, {transform_indices = @transform_1, window_bounds = array<i64: 1, 2, 128>}, {transform_indices = @transform_2, window_bounds = array<i64: 1, 2, 128>}, {transform_indices = @transform_3, window_bounds = array<i64: 1, 1, 1, 128>}, {transform_indices = @transform_4, window_bounds = array<i64: 1, 1, 1, 128>}]} {
    %c0 = arith.constant 0 : index
    %c0_0 = arith.constant 0 : index
    %c0_1 = arith.constant 0 : index
    %c0_2 = arith.constant 0 : index
    %0 = vector.load %arg2[%c0, %c0_0, %c0_1, %c0_2] : memref<1x4x2x128xf32, #tpu.memory_space<vmem>>, vector<1x4x2x128xf32>
    %1 = vector.shape_cast %0 : vector<1x4x2x128xf32> to vector<4x2x128xf32>
    %c0_3 = arith.constant 0 : index
    %c0_4 = arith.constant 0 : index
    %c0_5 = arith.constant 0 : index
    %2 = vector.load %arg3[%c0_3, %c0_4, %c0_5] : memref<1x2x128xi32, #tpu.memory_space<vmem>>, vector<1x2x128xi32>
    %3 = vector.shape_cast %2 : vector<1x2x128xi32> to vector<2x128xi32>
    %c0_6 = arith.constant 0 : index
    %c0_7 = arith.constant 0 : index
    %c0_8 = arith.constant 0 : index
    %4 = vector.load %arg4[%c0_6, %c0_7, %c0_8] : memref<1x2x128xf32, #tpu.memory_space<vmem>>, vector<1x2x128xf32>
    %5 = vector.shape_cast %4 : vector<1x2x128xf32> to vector<2x128xf32>
    %cst = arith.constant dense<0xFF800000> : vector<2x128xf32>
    %6 = vector.multi_reduction <maximumf>, %1, %cst [0] : vector<4x2x128xf32> to vector<2x128xf32>
    %7 = vector.shape_cast %6 : vector<2x128xf32> to vector<1x2x128xf32>
    %8 = vector.broadcast %7 : vector<1x2x128xf32> to vector<4x2x128xf32>
    %9 = arith.subf %1, %8 : vector<4x2x128xf32>
    %10 = math.exp %9 : vector<4x2x128xf32>
    %cst_9 = arith.constant dense<0.000000e+00> : vector<2x128xf32>
    %11 = vector.multi_reduction <add>, %10, %cst_9 [0] : vector<4x2x128xf32> to vector<2x128xf32>
    %12 = math.log %11 : vector<2x128xf32>
    %13 = arith.addf %12, %6 : vector<2x128xf32>
    %14 = tpu.iota {dimensions = array<i32: 0>} : vector<4x2x128xi32>
    %15 = vector.shape_cast %3 : vector<2x128xi32> to vector<1x2x128xi32>
    %16 = vector.broadcast %15 : vector<1x2x128xi32> to vector<4x2x128xi32>
    %17 = arith.cmpi eq, %14, %16 : vector<4x2x128xi32>
    %cst_10 = arith.constant 0.000000e+00 : f32
    %18 = vector.broadcast %cst_10 : f32 to vector<4x2x128xf32>
    %19 = arith.select %17, %1, %18 : vector<4x2x128xi1>, vector<4x2x128xf32>
    %cst_11 = arith.constant dense<0.000000e+00> : vector<2x128xf32>
    %20 = vector.multi_reduction <add>, %19, %cst_11 [0] : vector<4x2x128xf32> to vector<2x128xf32>
    %c-100_i32 = arith.constant -100 : i32
    %21 = vector.broadcast %c-100_i32 : i32 to vector<2x128xi32>
    %22 = arith.cmpi ne, %3, %21 : vector<2x128xi32>
    %23 = arith.subf %13, %20 : vector<2x128xf32>
    %cst_12 = arith.constant 0.000000e+00 : f32
    %24 = vector.broadcast %cst_12 : f32 to vector<2x128xf32>
    %25 = arith.select %22, %23, %24 : vector<2x128xi1>, vector<2x128xf32>
    %26 = arith.mulf %25, %5 : vector<2x128xf32>
    %cst_13 = arith.constant dense<0.000000e+00> : vector<128xf32>
    %27 = vector.multi_reduction <add>, %26, %cst_13 [0] : vector<2x128xf32> to vector<128xf32>
    %28 = vector.shape_cast %27 : vector<128xf32> to vector<1x128xf32>
    %29 = vector.shape_cast %28 : vector<1x128xf32> to vector<1x1x1x128xf32>
    %c0_14 = arith.constant 0 : index
    %c0_15 = arith.constant 0 : index
    %c0_16 = arith.constant 0 : index
    %c0_17 = arith.constant 0 : index
    %30 = vector.load %arg5[%c0_14, %c0_15, %c0_16, %c0_17] : memref<1x1x1x128xf32, #tpu.memory_space<vmem>>, vector<1x1x1x128xf32>
    tpu.vector_store %arg5[%c0_14, %c0_15, %c0_16, %c0_17], %29 {strides = array<i32>} : memref<1x1x1x128xf32, #tpu.memory_space<vmem>>, vector<1x1x1x128xf32>,
    %cst_18 = arith.constant dense<0.000000e+00> : vector<128xf32>
    %31 = vector.multi_reduction <add>, %5, %cst_18 [0] : vector<2x128xf32> to vector<128xf32>
    %32 = vector.shape_cast %31 : vector<128xf32> to vector<1x128xf32>
    %33 = vector.shape_cast %32 : vector<1x128xf32> to vector<1x1x1x128xf32>
    %c0_19 = arith.constant 0 : index
    %c0_20 = arith.constant 0 : index
    %c0_21 = arith.constant 0 : index
    %c0_22 = arith.constant 0 : index
    %34 = vector.load %arg6[%c0_19, %c0_20, %c0_21, %c0_22] : memref<1x1x1x128xf32, #tpu.memory_space<vmem>>, vector<1x1x1x128xf32>
    tpu.vector_store %arg6[%c0_19, %c0_20, %c0_21, %c0_22], %33 {strides = array<i32>} : memref<1x1x1x128xf32, #tpu.memory_space<vmem>>, vector<1x1x1x128xf32>,
    return
  }
  func.func @transform_0(%arg0: i32, %arg1: i32) -> (i32, i32, i32, i32) {
    %c0_i32 = arith.constant 0 : i32
    %c0_i32_0 = arith.constant 0 : i32
    %c0_i32_1 = arith.constant 0 : i32
    return %arg0, %c0_i32, %arg1, %c0_i32_0 : i32, i32, i32, i32
  }
  func.func @transform_1(%arg0: i32, %arg1: i32) -> (i32, i32, i32) {
    %c0_i32 = arith.constant 0 : i32
    %c0_i32_0 = arith.constant 0 : i32
    return %arg0, %arg1, %c0_i32 : i32, i32, i32
  }
  func.func @transform_2(%arg0: i32, %arg1: i32) -> (i32, i32, i32) {
    %c0_i32 = arith.constant 0 : i32
    %c0_i32_0 = arith.constant 0 : i32
    return %arg0, %arg1, %c0_i32 : i32, i32, i32
  }
  func.func @transform_3(%arg0: i32, %arg1: i32) -> (i32, i32, i32, i32) {
    %c0_i32 = arith.constant 0 : i32
    %c0_i32_0 = arith.constant 0 : i32
    %c0_i32_1 = arith.constant 0 : i32
    return %arg0, %arg1, %c0_i32, %c0_i32_0 : i32, i32, i32, i32
  }
  func.func @transform_4(%arg0: i32, %arg1: i32) -> (i32, i32, i32, i32) {
    %c0_i32 = arith.constant 0 : i32
    %c0_i32_0 = arith.constant 0 : i32
    %c0_i32_1 = arith.constant 0 : i32
    return %arg0, %arg1, %c0_i32, %c0_i32_0 : i32, i32, i32, i32
  }
}

</mosaic_0001>

<llo_original>
// kernel: tpu_custom_call.1
$region0: #{tpu_custom_call.1}
  #allocation0 [shape = 'u32[]', space=smem, size = 0x4, offset = 0x4, fixed_abs, tag = 'smem constant byte address 0x4 - core index']
  #allocation1 [shape = 'u32[144,128]{1,0:T(1,128)}', space=vmem, size = 0x12000, scoped, tag = 'internal scratch']
  %s0 = inlined_call_operand.hbm [shape: f32[2,4,2,128], index: 0, kind: input, shape index: {}]
  %s1 = inlined_call_operand.hbm [shape: s32[2,2,128], index: 1, kind: input, shape index: {}]
  %s2 = inlined_call_operand.vmem [shape: f32[2,2,128], index: 2, kind: input, shape index: {}]
  %s3 = inlined_call_operand.hbm [shape: f32[2,1,1,128], index: 3, kind: output, shape index: {0}]
  %s4 = inlined_call_operand.hbm [shape: f32[2,1,1,128], index: 4, kind: output, shape index: {1}]
  %5 = xla_tuple %s3, %s4
  %s6 = sld [smem:[#allocation0]]
  $region61: #{tpu_custom_call.1} parent=0
    _
  %s8 = ssub.s32 1, %s6
  %s9 = scalar_select 0, %s8, %s6
  $region1: #{tpu_custom_call.1} parent=0
    #allocation2 [shape = 'u8[8192]{0}', space=vmem, size = 0x2000, scoped, tag = 'input window, operand 0']
    #allocation3 [shape = 's32[2]{0}', space=sflag, size = 0x8, scoped, tag = 'scoped memory for tpu_custom_call.1']
    #allocation4 [shape = 's32[2]{0}', space=sflag, size = 0x8, scoped, tag = 'scoped memory for tpu_custom_call.1']
    #allocation5 [shape = 'u8[2048]{0}', space=vmem, size = 0x800, scoped, tag = 'input window, operand 1']
    #allocation6 [shape = 's32[2]{0}', space=sflag, size = 0x8, scoped, tag = 'scoped memory for tpu_custom_call.1']
    #allocation7 [shape = 'u8[1024]{0}', space=vmem, size = 0x400, scoped, tag = 'output window, operand 0']
    #allocation8 [shape = 'u8[1024]{0}', space=vmem, size = 0x400, scoped, tag = 'output window, operand 1']
    #allocation9 [shape = 's32[2]{0}', space=sflag, size = 0x8, scoped, tag = 'scoped memory for tpu_custom_call.1']
    %10 = vsyncpa [#allocation3], 0
    %s11 = scalar_lea.sflag [#allocation3], 1
    %12 = vsyncpa %s11, 0
    %13 = vsyncpa [#allocation6], 0
    %s14 = scalar_lea.sflag [#allocation6], 1
    %15 = vsyncpa %s14, 0
    %16 = vsyncpa [#allocation4], 0
    %s17 = scalar_lea.sflag [#allocation4], 1
    %18 = vsyncpa %s17, 0
    %19 = vsyncpa [#allocation9], 0
    %s20 = scalar_lea.sflag [#allocation9], 1
    %21 = vsyncpa %s20, 0
    loop: start=0, step=1, limit=4
    $region2: #{tpu_custom_call.1} parent=1 // loop_pre_header
      _
    $region3: #{tpu_custom_call.1} parent=1 // loop_header
      %s23 = sphi 0, %s27
      %p24 = scmp.ge.s32.totalorder %s23, 4
      %s30 = sphi 0, %s42
      %s31 = sphi 0, %s38
      %s32 = sphi 0, %s30
      %s33 = sphi 0, %s31
      %s34 = sphi 0, %s32
      %s35 = sphi 0, %s33
      %s47 = sphi 0, %s49
      %s50 = sphi 0, %s47
      %s51 = sphi 0, %s50
      %s67 = sphi 0, %s51
      %s75 = sphi 0, %s77
      %s78 = sphi 0, %s75
      %s79 = sphi 0, %s78
      %s95 = sphi 0, %s79
      %s103 = sphi 0, %s105
      %s106 = sphi 0, %s103
      %s107 = sphi 0, %s106
      %s123 = sphi 0, %s107
      %s131 = sphi 0, %s133
      %s134 = sphi 0, %s131
      %s135 = sphi 0, %s134
      %s151 = sphi 0, %s135
      %s159 = sphi 0, %s161
      %s162 = sphi 0, %s159
      %s163 = sphi 0, %s162
      %s179 = sphi 0, %s163
    $region4: #{tpu_custom_call.1} parent=1 // loop_header_branch
      %26 = sbr.rel (%p24) target = $region8
    $region5: #{tpu_custom_call.1} parent=1 // loop_body
      %s28 = ssub.s32 %s23, 1
      %s29 = ssub.s32 %s23, 2
      %s36 = sadd.s32 1, %s31
      %p37 = scmp.ge.s32.totalorder %s36, 1
      %s38 = scalar_select %p37, 0, %s36
      %s39 = sadd.s32 1, %s30
      %s40 = scalar_select %p37, %s39, %s30
      %p41 = scmp.ge.s32.totalorder %s40, 2
      %s42 = scalar_select %p41, 0, %s40
      %s43 = ssub.s32 %s30, %s42
      %s44 = ssub.s32 %s31, %s38
      %s45 = sor.u32 %s43, %s44
      %p46 = scmp.eq.s32.totalorder %s45, 0
      %s48 = sadd.s32 %s47, 1
      %s49 = scalar_select %p46, %s47, %s48
      %p52 = pneg %p46
      %p53 = scmp.eq.s32.totalorder %s23, 1
      %p54 = por %p52, %p53
      %p55 = scmp.ne.s32.totalorder %s47, %s50
      %p56 = scmp.eq.s32.totalorder %s23, 0
      %p57 = por %p55, %p56
      %p58 = scmp.ne.s32.totalorder %s47, %s50
      %p59 = scmp.eq.s32.totalorder %s28, 1
      %p60 = por %p58, %p59
      %p61 = scmp.ne.s32.totalorder %s50, %s51
      %p62 = scmp.eq.s32.totalorder %s28, 0
      %p63 = por %p61, %p62
      %p64 = scmp.ne.s32.totalorder %s50, %s51
      %p65 = scmp.eq.s32.totalorder %s29, 1
      %p66 = por %p64, %p65
      %p68 = scmp.ne.s32.totalorder %s51, %s67
      %p69 = scmp.eq.s32.totalorder %s29, 0
      %p70 = por %p68, %p69
      %s71 = ssub.s32 %s30, %s42
      %s72 = ssub.s32 %s31, %s38
      %s73 = sor.u32 %s71, %s72
      %p74 = scmp.eq.s32.totalorder %s73, 0
      %s76 = sadd.s32 %s75, 1
      %s77 = scalar_select %p74, %s75, %s76
      %p80 = pneg %p74
      %p81 = scmp.eq.s32.totalorder %s23, 1
      %p82 = por %p80, %p81
      %p83 = scmp.ne.s32.totalorder %s75, %s78
      %p84 = scmp.eq.s32.totalorder %s23, 0
      %p85 = por %p83, %p84
      %p86 = scmp.ne.s32.totalorder %s75, %s78
      %p87 = scmp.eq.s32.totalorder %s28, 1
      %p88 = por %p86, %p87
      %p89 = scmp.ne.s32.totalorder %s78, %s79
      %p90 = scmp.eq.s32.totalorder %s28, 0
      %p91 = por %p89, %p90
      %p92 = scmp.ne.s32.totalorder %s78, %s79
      %p93 = scmp.eq.s32.totalorder %s29, 1
      %p94 = por %p92, %p93
      %p96 = scmp.ne.s32.totalorder %s79, %s95
      %p97 = scmp.eq.s32.totalorder %s29, 0
      %p98 = por %p96, %p97
      %s99 = ssub.s32 %s30, %s42
      %s100 = ssub.s32 %s31, %s38
      %s101 = sor.u32 %s99, %s100
      %p102 = scmp.eq.s32.totalorder %s101, 0
      %s104 = sadd.s32 %s103, 1
      %s105 = scalar_select %p102, %s103, %s104
      %p108 = pneg %p102
      %p109 = scmp.eq.s32.totalorder %s23, 1
      %p110 = por %p108, %p109
      %p111 = scmp.ne.s32.totalorder %s103, %s106
      %p112 = scmp.eq.s32.totalorder %s23, 0
      %p113 = por %p111, %p112
      %p114 = scmp.ne.s32.totalorder %s103, %s106
      %p115 = scmp.eq.s32.totalorder %s28, 1
      %p116 = por %p114, %p115
      %p117 = scmp.ne.s32.totalorder %s106, %s107
      %p118 = scmp.eq.s32.totalorder %s28, 0
      %p119 = por %p117, %p118
      %p120 = scmp.ne.s32.totalorder %s106, %s107
      %p121 = scmp.eq.s32.totalorder %s29, 1
      %p122 = por %p120, %p121
      %p124 = scmp.ne.s32.totalorder %s107, %s123
      %p125 = scmp.eq.s32.totalorder %s29, 0
      %p126 = por %p124, %p125
      %s127 = ssub.s32 %s30, %s42
      %s128 = ssub.s32 %s31, %s38
      %s129 = sor.u32 %s127, %s128
      %p130 = scmp.eq.s32.totalorder %s129, 0
      %s132 = sadd.s32 %s131, 1
      %s133 = scalar_select %p130, %s131, %s132
      %p136 = pneg %p130
      %p137 = scmp.eq.s32.totalorder %s23, 1
      %p138 = por %p136, %p137
      %p139 = scmp.ne.s32.totalorder %s131, %s134
      %p140 = scmp.eq.s32.totalorder %s23, 0
      %p141 = por %p139, %p140
      %p142 = scmp.ne.s32.totalorder %s131, %s134
      %p143 = scmp.eq.s32.totalorder %s28, 1
      %p144 = por %p142, %p143
      %p145 = scmp.ne.s32.totalorder %s134, %s135
      %p146 = scmp.eq.s32.totalorder %s28, 0
      %p147 = por %p145, %p146
      %p148 = scmp.ne.s32.totalorder %s134, %s135
      %p149 = scmp.eq.s32.totalorder %s29, 1
      %p150 = por %p148, %p149
      %p152 = scmp.ne.s32.totalorder %s135, %s151
      %p153 = scmp.eq.s32.totalorder %s29, 0
      %p154 = por %p152, %p153
      %s155 = ssub.s32 %s30, %s42
      %s156 = ssub.s32 %s31, %s38
      %s157 = sor.u32 %s155, %s156
      %p158 = scmp.eq.s32.totalorder %s157, 0
      %s160 = sadd.s32 %s159, 1
      %s161 = scalar_select %p158, %s159, %s160
      %p164 = pneg %p158
      %p165 = scmp.eq.s32.totalorder %s23, 1
      %p166 = por %p164, %p165
      %p167 = scmp.ne.s32.totalorder %s159, %s162
      %p168 = scmp.eq.s32.totalorder %s23, 0
      %p169 = por %p167, %p168
      %p170 = scmp.ne.s32.totalorder %s159, %s162
      %p171 = scmp.eq.s32.totalorder %s28, 1
      %p172 = por %p170, %p171
      %p173 = scmp.ne.s32.totalorder %s162, %s163
      %p174 = scmp.eq.s32.totalorder %s28, 0
      %p175 = por %p173, %p174
      %p176 = scmp.ne.s32.totalorder %s162, %s163
      %p177 = scmp.eq.s32.totalorder %s29, 1
      %p178 = por %p176, %p177
      %p180 = scmp.ne.s32.totalorder %s163, %s179
      %p181 = scmp.eq.s32.totalorder %s29, 0
      %p182 = por %p180, %p181
      %p183 = scmp.le.s32.totalorder 1, %s23
      %p184 = scmp.lt.s32.totalorder %s23, 3
      %p185 = pnand %p183, %p184
      %p186 = pneg %p185
      // Predicated region
      $region9: #{tpu_custom_call.1} parent=5 // pred_check
        _
      $region10: #{tpu_custom_call.1} parent=5 // pred_check_branch
        %188 = sbr.rel (%p185) target = $region12
      $region11: #{tpu_custom_call.1} parent=5 // pred_region
        %s189 = ssub.s32 %s23, 1
      $region12: #{tpu_custom_call.1} parent=5 // pred_fallthru
        _
      %p190 = scmp.lt.s32.totalorder %s23, 2
      // Predicated region
      $region13: #{tpu_custom_call.1} parent=5 // pred_check
        %p191 = pneg %p190
      $region14: #{tpu_custom_call.1} parent=5 // pred_check_branch
        %193 = sbr.rel (%p191) target = $region16
      $region15: #{tpu_custom_call.1} parent=5 // pred_region
        // Predicated region
        $region17: #{tpu_custom_call.1} parent=15 // pred_check
          %p194 = pneg %p57
        $region18: #{tpu_custom_call.1} parent=15 // pred_check_branch
          %196 = sbr.rel (%p194) target = $region20
        $region19: #{tpu_custom_call.1} parent=15 // pred_region
          %s197 = sand.u32 %s47, 1
          %s198 = scalar_lea.sflag [#allocation3], %s197
          %s199 = sand.u32 %s47, 1
          %s200 = smul.addr %s199, 8
          %s201 = scalar_lea.vmem [#allocation2], %s200
          %s203 = ssub.s32 128, 128
          %204 = vsyncadd %s198, %s203
          %s205 = smul.addr %s30, 4
          %s206 = sadd.s32 %s31, %s205
          %s207 = smul.addr %s206, 32
          %s208 = scalar_lea.hbm %s0, %s207
          %s209 = sshll.u32 %s201, 4
          %s210 = int_to_ptr.vmem [resolvable:$true] %s209
          %215 = dma.hbm_to_vmem [thread:$0]  %s208, 128, %s210, %s198, 32, 32, 2
        $region20: #{tpu_custom_call.1} parent=15 // pred_fallthru
          _
        // Predicated region
        $region21: #{tpu_custom_call.1} parent=15 // pred_check
          %p216 = pneg %p85
        $region22: #{tpu_custom_call.1} parent=15 // pred_check_branch
          %218 = sbr.rel (%p216) target = $region24
        $region23: #{tpu_custom_call.1} parent=15 // pred_region
          %s219 = sand.u32 %s75, 1
          %s220 = scalar_lea.sflag [#allocation6], %s219
          %s221 = sand.u32 %s75, 1
          %s222 = smul.addr %s221, 2
          %s223 = scalar_lea.vmem [#allocation5], %s222
          %s225 = ssub.s32 32, 32
          %226 = vsyncadd %s220, %s225
          %s227 = sadd.s32 %s31, %s30
          %s228 = smul.addr %s227, 32
          %s229 = scalar_lea.hbm %s1, %s228
          %s231 = sshll.u32 %s223, 4
          %s232 = int_to_ptr.vmem [resolvable:$true] %s231
          %234 = dma.hbm_to_vmem [thread:$0]  %s229, 32, %s232, %s220
        $region24: #{tpu_custom_call.1} parent=15 // pred_fallthru
          _
        // Predicated region
        $region25: #{tpu_custom_call.1} parent=15 // pred_check
          %p235 = pneg %p113
        $region26: #{tpu_custom_call.1} parent=15 // pred_check_branch
          %237 = sbr.rel (%p235) target = $region28
        $region27: #{tpu_custom_call.1} parent=15 // pred_region
          %p238 = scmp.lt.s32.totalorder %s30, 1
          %s239 = scalar_select %p238, %s30, 1
          %p240 = scmp.lt.s32.totalorder %s31, 0
          %s241 = scalar_select %p240, %s31, 0
          %s242 = sadd.s32 %s241, %s239
          %s243 = smul.addr %s242, 2
          %s244 = scalar_lea.vmem %s2, %s243
        $region28: #{tpu_custom_call.1} parent=15 // pred_fallthru
          _
      $region16: #{tpu_custom_call.1} parent=5 // pred_fallthru
        _
      %p245 = scmp.le.s32.totalorder 1, %s23
      %p246 = scmp.lt.s32.totalorder %s23, 3
      %p247 = pnand %p245, %p246
      %p248 = pneg %p247
      // Predicated region
      $region29: #{tpu_custom_call.1} parent=5 // pred_check
        _
      $region30: #{tpu_custom_call.1} parent=5 // pred_check_branch
        %250 = sbr.rel (%p247) target = $region32
      $region31: #{tpu_custom_call.1} parent=5 // pred_region
        %s251 = ssub.s32 %s23, 1
        %s252 = sand.u32 %s50, 1
        %s253 = scalar_lea.sflag [#allocation3], %s252
        %s254 = sand.u32 %s50, 1
        %s255 = smul.addr %s254, 8
        %s256 = scalar_lea.vmem [#allocation2], %s255
        // Predicated region
        $region33: #{tpu_custom_call.1} parent=31 // pred_check
          %p257 = pneg %p63
        $region34: #{tpu_custom_call.1} parent=31 // pred_check_branch
          %259 = sbr.rel (%p257) target = $region36
        $region35: #{tpu_custom_call.1} parent=31 // pred_region
          %260 = dma.done %s253, 128
        $region36: #{tpu_custom_call.1} parent=31 // pred_fallthru
          _
        %s261 = sand.u32 %s78, 1
        %s262 = scalar_lea.sflag [#allocation6], %s261
        %s263 = sand.u32 %s78, 1
        %s264 = smul.addr %s263, 2
        %s265 = scalar_lea.vmem [#allocation5], %s264
        // Predicated region
        $region37: #{tpu_custom_call.1} parent=31 // pred_check
          %p266 = pneg %p91
        $region38: #{tpu_custom_call.1} parent=31 // pred_check_branch
          %268 = sbr.rel (%p266) target = $region40
        $region39: #{tpu_custom_call.1} parent=31 // pred_region
          %269 = dma.done %s262, 32
        $region40: #{tpu_custom_call.1} parent=31 // pred_fallthru
          _
        %s270 = sand.u32 %s50, 1
        %s271 = scalar_lea.sflag [#allocation3], %s270
        %s272 = sand.u32 %s50, 1
        %s273 = smul.addr %s272, 8
        %s274 = scalar_lea.vmem [#allocation2], %s273
        %p275 = pneg %p63
        %p276 = pneg %p60
        %s277 = sand.u32 %s78, 1
        %s278 = scalar_lea.sflag [#allocation6], %s277
        %s279 = sand.u32 %s78, 1
        %s280 = smul.addr %s279, 2
        %s281 = scalar_lea.vmem [#allocation5], %s280
        %p282 = pneg %p91
        %p283 = pneg %p88
        %p284 = scmp.lt.s32.totalorder %s32, 1
        %s285 = scalar_select %p284, %s32, 1
        %p286 = scmp.lt.s32.totalorder %s33, 0
        %s287 = scalar_select %p286, %s33, 0
        %s288 = sadd.s32 %s287, %s285
        %s289 = smul.addr %s288, 2
        %s290 = scalar_lea.vmem %s2, %s289
        %p291 = pneg %p119
        %p292 = pneg %p116
        %p293 = pneg %p147
        %p294 = pneg %p144
        %s295 = sand.u32 %s134, 1
        %s296 = scalar_lea.sflag [#allocation4], %s295
        %s297 = sand.u32 %s134, 1
        %s298 = scalar_lea.vmem [#allocation7], %s297
        %p299 = pneg %p175
        %p300 = pneg %p172
        %s301 = sand.u32 %s162, 1
        %s302 = scalar_lea.sflag [#allocation9], %s301
        %s303 = sand.u32 %s162, 1
        %s304 = scalar_lea.vmem [#allocation8], %s303
        %p305 = scmp.lt.s32.totalorder %s32, 1
        %s306 = scalar_select %p305, %s32, 1
        %p307 = scmp.lt.s32.totalorder %s33, 0
        %s308 = scalar_select %p307, %s33, 0
        %s309 = sadd.s32 %s308, %s306
        %s310 = smul.addr %s309, 2
        %s311 = scalar_lea.vmem %s2, %s310
        %v312 = vld [vmem:[%s256] sm:$0x3]
        %v313 = vld [vmem:[%s256 + $0x2] sm:$0x3]
        %v314 = vld [vmem:[%s256 + $0x4] sm:$0x3]
        %v315 = vld [vmem:[%s256 + $0x6] sm:$0x3]
        %v316 = vld [vmem:[%s265] sm:$0x3]
        %v317 = vld [vmem:[%s311] sm:$0x3]
        %vm318 = vcmask 1041408
        %v319 = vsel %vm318, %v312, -inf
        %v320 = vsel %vm318, %v313, -inf
        %v321 = vsel %vm318, %v314, -inf
        %v322 = vsel %vm318, %v315, -inf
        %v323 = vmax.f32 %v319, %v320
        %v324 = vmax.f32 %v321, %v322
        %v325 = vmax.f32 %v323, %v324
        %v326 = vsub.f32 %v312, %v325
        %v327 = vsub.f32 %v313, %v325
        %v328 = vsub.f32 %v314, %v325
        %v329 = vsub.f32 %v315, %v325
        %v330 = vmul.f32 %v326, 1.442695
        %v331 = vpow.pop %v330
        %v332 = vmul.f32 %v327, 1.442695
        %v333 = vpow.pop %v332
        %v334 = vmul.f32 %v328, 1.442695
        %v335 = vpow.pop %v334
        %v336 = vmul.f32 %v329, 1.442695
        %v337 = vpow.pop %v336
        %v338 = vsel %vm318, %v331, 0.0
        %v339 = vsel %vm318, %v333, 0.0
        %v340 = vadd.f32 %v338, %v339
        %v341 = vsel %vm318, %v335, 0.0
        %v342 = vadd.f32 %v340, %v341
        %v343 = vsel %vm318, %v337, 0.0
        %v344 = vadd.f32 %v342, %v343
        %v345 = vlog2.pop %v344
        %v346 = vmul.f32 %v345, 0.6931472
        %v347 = vadd.f32 %v346, %v325
        %vm348 = vcmp.eq.s32.totalorder %v316, 0
        %vm349 = vcmp.eq.s32.totalorder %v316, 1
        %vm350 = vcmp.eq.s32.totalorder %v316, 2
        %vm351 = vcmp.eq.s32.totalorder %v316, 3
        %v352 = vsel %vm348, %v312, 0.0
        %v353 = vsel %vm349, %v313, 0.0
        %v354 = vsel %vm350, %v314, 0.0
        %v355 = vsel %vm351, %v315, 0.0
        %v356 = vsel %vm318, %v352, 0.0
        %v357 = vsel %vm318, %v353, 0.0
        %v358 = vadd.f32 %v356, %v357
        %v359 = vsel %vm318, %v354, 0.0
        %v360 = vadd.f32 %v358, %v359
        %v361 = vsel %vm318, %v355, 0.0
        %v362 = vadd.f32 %v360, %v361
        %vm363 = vcmp.ne.s32.totalorder %v316, 4294967196
        %v364 = vsub.f32 %v347, %v362
        %v365 = vsel %vm363, %v364, 0.0
        %v366 = vmul.f32 %v365, %v317
        %v367 = vsel %vm318, %v366, 0.0
        %v368 = vrot.slane %v367, 4
        %v369 = vadd.f32 %v367, %v368
        %v370 = vrot.slane %v369, 2
        %v371 = vadd.f32 %v369, %v370
        %v372 = vrot.slane %v371, 1
        %v373 = vadd.f32 %v371, %v372
        %374 = vst [vmem:[%s298] sm:$0x1] %v373
        %v375 = vsel %vm318, %v317, 0.0
        %v376 = vrot.slane %v375, 4
        %v377 = vadd.f32 %v375, %v376
        %v378 = vrot.slane %v377, 2
        %v379 = vadd.f32 %v377, %v378
        %v380 = vrot.slane %v379, 1
        %v381 = vadd.f32 %v379, %v380
        %382 = vst [vmem:[%s304] sm:$0x1] %v381
        %s383 = sand.u32 %s134, 1
        %s384 = scalar_lea.sflag [#allocation4], %s383
        %s385 = sand.u32 %s134, 1
        %s386 = scalar_lea.vmem [#allocation7], %s385
        %s387 = sand.u32 %s162, 1
        %s388 = scalar_lea.sflag [#allocation9], %s387
        %s389 = sand.u32 %s162, 1
        %s390 = scalar_lea.vmem [#allocation8], %s389
        // Predicated region
        $region41: #{tpu_custom_call.1} parent=31 // pred_check
          %p391 = pneg %p144
        $region42: #{tpu_custom_call.1} parent=31 // pred_check_branch
          %393 = sbr.rel (%p391) target = $region44
        $region43: #{tpu_custom_call.1} parent=31 // pred_region
          %s395 = ssub.s32 16, 16
          %396 = vsyncadd %s384, %s395
          %s397 = sadd.s32 %s33, %s32
          %s398 = smul.addr %s397, 16
          %s399 = scalar_lea.hbm %s3, %s398
          %s401 = sshll.u32 %s386, 4
          %s402 = int_to_ptr.vmem [resolvable:$true] %s401
          %404 = dma.vmem_to_hbm [thread:$0]  %s402, 16, %s399, %s384
        $region44: #{tpu_custom_call.1} parent=31 // pred_fallthru
          _
        // Predicated region
        $region45: #{tpu_custom_call.1} parent=31 // pred_check
          %p405 = pneg %p172
        $region46: #{tpu_custom_call.1} parent=31 // pred_check_branch
          %407 = sbr.rel (%p405) target = $region48
        $region47: #{tpu_custom_call.1} parent=31 // pred_region
          %s409 = ssub.s32 16, 16
          %410 = vsyncadd %s388, %s409
          %s411 = sadd.s32 %s33, %s32
          %s412 = smul.addr %s411, 16
          %s413 = scalar_lea.hbm %s4, %s412
          %s415 = sshll.u32 %s390, 4
          %s416 = int_to_ptr.vmem [resolvable:$true] %s415
          %418 = dma.vmem_to_hbm [thread:$0]  %s416, 16, %s413, %s388
        $region48: #{tpu_custom_call.1} parent=31 // pred_fallthru
          _
      $region32: #{tpu_custom_call.1} parent=5 // pred_fallthru
        _
      %p419 = scmp.le.s32.totalorder 2, %s23
      // Predicated region
      $region49: #{tpu_custom_call.1} parent=5 // pred_check
        %p420 = pneg %p419
      $region50: #{tpu_custom_call.1} parent=5 // pred_check_branch
        %422 = sbr.rel (%p420) target = $region52
      $region51: #{tpu_custom_call.1} parent=5 // pred_region
        %s423 = ssub.s32 %s23, 2
        // Predicated region
        $region53: #{tpu_custom_call.1} parent=51 // pred_check
          %p424 = pneg %p150
        $region54: #{tpu_custom_call.1} parent=51 // pred_check_branch
          %426 = sbr.rel (%p424) target = $region56
        $region55: #{tpu_custom_call.1} parent=51 // pred_region
          %s427 = sand.u32 %s135, 1
          %s428 = scalar_lea.sflag [#allocation4], %s427
          %s429 = sand.u32 %s135, 1
          %s430 = scalar_lea.vmem [#allocation7], %s429
          %431 = dma.done %s428, 16
        $region56: #{tpu_custom_call.1} parent=51 // pred_fallthru
          _
        // Predicated region
        $region57: #{tpu_custom_call.1} parent=51 // pred_check
          %p432 = pneg %p178
        $region58: #{tpu_custom_call.1} parent=51 // pred_check_branch
          %434 = sbr.rel (%p432) target = $region60
        $region59: #{tpu_custom_call.1} parent=51 // pred_region
          %s435 = sand.u32 %s163, 1
          %s436 = scalar_lea.sflag [#allocation9], %s435
          %s437 = sand.u32 %s163, 1
          %s438 = scalar_lea.vmem [#allocation8], %s437
          %439 = dma.done %s436, 16
        $region60: #{tpu_custom_call.1} parent=51 // pred_fallthru
          _
      $region52: #{tpu_custom_call.1} parent=5 // pred_fallthru
        _
    $region6: #{tpu_custom_call.1} parent=1 // loop_footer
      %s27 = sadd.s32 1, %s23
    $region7: #{tpu_custom_call.1} parent=1 // loop_footer_branch
      %22 = sbr.rel target = $region3
    $region8: #{tpu_custom_call.1} parent=1 // loop_exit
      _
    %440 = vsyncpa [#allocation3], 1
    %s441 = scalar_lea.sflag [#allocation3], 1
    %442 = vsyncpa %s441, 1
    %443 = vsyncpa [#allocation6], 1
    %s444 = scalar_lea.sflag [#allocation6], 1
    %445 = vsyncpa %s444, 1
    %446 = vsyncpa [#allocation4], 1
    %s447 = scalar_lea.sflag [#allocation4], 1
    %448 = vsyncpa %s447, 1
    %449 = vsyncpa [#allocation9], 1
    %s450 = scalar_lea.sflag [#allocation9], 1
    %451 = vsyncpa %s450, 1

</llo_original>
